<compile_context>
chip_gen: v7x
topology: tpu7x:2x2x1
jax: 0.10.0
libtpu: 0.0.40
codegen_flags: <defaults>
</compile_context>

<pallas_src>
import functools

import jax
import jax.numpy as jnp
from jax.experimental import pallas as pl
from jax.experimental.pallas import tpu as pltpu

_INV_SQRT2 = 0.7071067811865476  # hoisted constant for exact (erf) GELU


def _round_up(n, m):
    return ((n + m - 1) // m) * m


# --------------------------------------------------------------------------- #
# Kernel
# --------------------------------------------------------------------------- #
def _fused_head_kernel(x_ref, w1_ref, b1_ref, w2s_ref, w2t_ref, b2s_ref, b2t_ref,
                       os_ref, ot_ref, h_ref):
    # Grid: (i over batch-row tiles [parallel], j over D_out tiles [arbitrary]).
    #   x_ref:   [tm, D_in]                (compute dtype, bf16)
    #   w1_ref:  [D_in, 2*H_pad]           b1_ref: [1, 2*H_pad]  (bias f32)
    #   w2s/t:   [H_pad, tn]               b2s/t:  [1, tn]       (bias f32)
    #   os/ot:   [tm, tn]                  (f32 outputs)
    #   h_ref:   [tm, 2*H_pad] VMEM scratch, persists across the j axis.
    half = w2s_ref.shape[0]  # H_pad

    @pl.when(pl.program_id(1) == 0)
    def _():
        # One MXU pass covers BOTH branches (N = 2*H_pad).
        h = jnp.dot(x_ref[...], w1_ref[...], preferred_element_type=jnp.float32)
        h = h + b1_ref[...]
        # Exact erf-based GELU (torch.nn.GELU default), kept in f32.
        h = 0.5 * h * (1.0 + jax.lax.erf(h * _INV_SQRT2))
        h_ref[...] = h.astype(h_ref.dtype)

    # Two DENSE second-layer GEMMs (no block-diagonal zeros).
    h_s = h_ref[:, :half]
    h_t = h_ref[:, half:]
    os_ref[...] = (jnp.dot(h_s, w2s_ref[...], preferred_element_type=jnp.float32)
                   + b2s_ref[...]).astype(os_ref.dtype)
    ot_ref[...] = (jnp.dot(h_t, w2t_ref[...], preferred_element_type=jnp.float32)
                   + b2t_ref[...]).astype(ot_ref.dtype)


def _fused_head_pallas(x_flat, w1_cat, b1_cat, w2_s, w2_t, b2_s, b2_t,
                       *, tm, tn, out_dtype):
    B_pad, D_in = x_flat.shape
    H2 = w1_cat.shape[1]
    H_pad = w2_s.shape[0]
    Dp = w2_s.shape[1]
    grid = (B_pad // tm, Dp // tn)

    c_bytes = jnp.dtype(x_flat.dtype).itemsize
    o_bytes = jnp.dtype(out_dtype).itemsize
    # Resident-VMEM estimate assuming default double-buffering on every operand.
    est = 2 * (tm * D_in * c_bytes                        # x tile
               + D_in * H2 * c_bytes + H2 * 4             # w1, b1
               + 2 * (H_pad * tn * c_bytes + tn * 4)      # w2s/w2t, b2s/b2t
               + 2 * tm * tn * o_bytes)                   # two output tiles
    est += tm * H2 * c_bytes                              # h scratch
    vmem_limit = int(min(max(est * 3 // 2, 32 * 1024 * 1024), 100 * 1024 * 1024))

    return pl.pallas_call(
        _fused_head_kernel,
        out_shape=(jax.ShapeDtypeStruct((B_pad, Dp), out_dtype),
                   jax.ShapeDtypeStruct((B_pad, Dp), out_dtype)),
        grid_spec=pltpu.PrefetchScalarGridSpec(
            num_scalar_prefetch=0,
            grid=grid,
            in_specs=[
                pl.BlockSpec((tm, D_in), lambda i, j: (i, 0)),
                # Grid-invariant weights: constant index_map -> Pallas keeps the
                # resident copy (no re-DMA between consecutive steps).
                pl.BlockSpec((D_in, H2), lambda i, j: (0, 0)),
                pl.BlockSpec((1, H2), lambda i, j: (0, 0)),
                # D_out-tiled second-layer weights/biases.
                pl.BlockSpec((H_pad, tn), lambda i, j: (0, j)),
                pl.BlockSpec((H_pad, tn), lambda i, j: (0, j)),
                pl.BlockSpec((1, tn), lambda i, j: (0, j)),
                pl.BlockSpec((1, tn), lambda i, j: (0, j)),
            ],
            out_specs=(pl.BlockSpec((tm, tn), lambda i, j: (i, j)),
                       pl.BlockSpec((tm, tn), lambda i, j: (i, j))),
            scratch_shapes=[pltpu.VMEM((tm, H2), x_flat.dtype)],
        ),
        compiler_params=pltpu.CompilerParams(
            # Row tiles are independent -> megacore can split the M axis.
            # N axis is "arbitrary": j > 0 reuses the h scratch written at j==0.
            dimension_semantics=("parallel", "arbitrary"),
            vmem_limit_bytes=vmem_limit,
        ),
    )(x_flat, w1_cat, b1_cat, w2_s, w2_t, b2_s, b2_t)


# --------------------------------------------------------------------------- #
# Forward (jitted) + weight pre-fusion (done once, outside the hot path)
# --------------------------------------------------------------------------- #
def _teacher_student_forward(x_nchw, fused, *, d_out, compute_dtype, out_dtype):
    B = x_nchw.shape[0]
    x_flat = x_nchw.reshape(B, -1).astype(compute_dtype)

    Dp = fused["w2_s"].shape[1]

    # Row tile: bf16 packs 16 rows per sublane group; grow to 256/512 for real
    # batches to amortize per-grid-step overhead.
    row_mult = 16 if jnp.dtype(compute_dtype) == jnp.dtype(jnp.bfloat16) else 8
    if B >= 128:
        tm = min(512, _round_up(B, 128))
    else:
        tm = _round_up(B, row_mult)
    B_pad = _round_up(B, tm)
    if B_pad != B:
        x_flat = jnp.pad(x_flat, ((0, B_pad - B), (0, 0)))

    # D_out tile: full extent when small, lane-dense 512-wide tiles otherwise.
    tn = Dp if Dp <= 512 else 512

    y_s, y_t = _fused_head_pallas(
        x_flat, fused["w1"], fused["b1"], fused["w2_s"], fused["w2_t"],
        fused["b2_s"], fused["b2_t"], tm=tm, tn=tn, out_dtype=out_dtype)

    y_s = y_s[:B, :d_out]
    y_t = y_t[:B, :d_out]
    # torch.no_grad() on the teacher branch -> stop_gradient.
    return y_s, jax.lax.stop_gradient(y_t)


def _fuse_params(student, teacher, compute_dtype):
    """Pre-fuse + cast weights (called at init and after each EMA update)."""
    d_out = student["w2"].shape[1]
    h = student["w1"].shape[1]
    h_pad = _round_up(h, 128)                       # lane-aligned hidden halves
    d_pad = d_out if d_out <= 512 else _round_up(d_out, 512)

    def pad_cols(a, n):
        return a if a.shape[1] == n else jnp.pad(a, ((0, 0), (0, n - a.shape[1])))

    def pad_rows(a, n):
        return a if a.shape[0] == n else jnp.pad(a, ((0, n - a.shape[0]), (0, 0)))

    w1_s = pad_cols(student["w1"], h_pad)
    w1_t = pad_cols(teacher["w1"], h_pad)
    b1_s = pad_cols(student["b1"], h_pad)
    b1_t = pad_cols(teacher["b1"], h_pad)
    w2_s = pad_cols(pad_rows(student["w2"], h_pad), d_pad)
    w2_t = pad_cols(pad_rows(teacher["w2"], h_pad), d_pad)
    b2_s = pad_cols(student["b2"], d_pad)
    b2_t = pad_cols(teacher["b2"], d_pad)

    fused = {
        # First layer: one [D_in, 2*H_pad] GEMM feeds both branches.
        "w1": jnp.concatenate([w1_s, w1_t], axis=1).astype(compute_dtype),
        "b1": jnp.concatenate([b1_s, b1_t], axis=1).astype(jnp.float32),
        # Second layer: two dense weights (student / teacher), no zero padding
        # beyond alignment.
        "w2_s": w2_s.astype(compute_dtype),
        "w2_t": w2_t.astype(compute_dtype),
        "b2_s": b2_s.astype(jnp.float32),
        "b2_t": b2_t.astype(jnp.float32),
    }
    return fused, d_out


class TeacherStudentPallas:
    """JAX/Pallas equivalent of the PyTorch TeacherStudent wrapper."""

    def __init__(self, params, update_rate: float = 0.9,
                 compute_dtype=jnp.bfloat16, out_dtype=jnp.float32):
        # copy.deepcopy semantics: student and teacher start with identical weights.
        self.student = dict(params)
        self.teacher = dict(params)
        self.update_rate = update_rate
        # bf16 operands on all generations (MXU consumes bf16, accumulates f32).
        self.compute_dtype = compute_dtype
        self.out_dtype = out_dtype
        self._fused, self._d_out = _fuse_params(self.student, self.teacher,
                                                self.compute_dtype)
        self._fwd = jax.jit(functools.partial(
            _teacher_student_forward, d_out=self._d_out,
            compute_dtype=self.compute_dtype, out_dtype=self.out_dtype))

    def _refresh_fused(self):
        self._fused, _ = _fuse_params(self.student, self.teacher, self.compute_dtype)

    def forward(self, x_nchw):
        return self._fwd(x_nchw, self._fused)

    def __call__(self, x_nchw):
        return self.forward(x_nchw)

    def parameters(self):
        # Only the student is trainable (matches the PyTorch override).
        return self.student

    def update_teacher_weight(self):
        # EMA update (plain-JAX glue; not part of forward), then re-fuse once.
        r = self.update_rate
        self.teacher = {
            k: r * self.teacher[k] + (1.0 - r) * jax.lax.stop_gradient(self.student[k])
            for k in self.teacher
        }
        self._refresh_fused()


def init_params(key, d_in, hidden, d_out):
    k1, k2 = jax.random.split(key)
    lim1 = 1.0 / jnp.sqrt(jnp.float32(d_in))
    lim2 = 1.0 / jnp.sqrt(jnp.float32(hidden))
    return {
        "w1": jax.random.uniform(k1, (d_in, hidden), jnp.float32, -lim1, lim1),
        "b1": jnp.zeros((1, hidden), jnp.float32),
        "w2": jax.random.uniform(k2, (hidden, d_out), jnp.float32, -lim2, lim2),
        "b2": jnp.zeros((1, d_out), jnp.float32),
    }


if __name__ == "__main__":
    key = jax.random.PRNGKey(0)
    k_x, k_p = jax.random.split(key)

    # Small shapes consistent with the module: NCHW image input.
    B, C, Hsp, Wsp = 2, 4, 16, 16
    D_in = C * Hsp * Wsp          # 1024
    HIDDEN, D_OUT = 128, 64       # fused first layer N = 256; D_out tile = 64

    x = jax.random.normal(k_x, (B, C, Hsp, Wsp), dtype=jnp.float32)
    params = init_params(k_p, D_in, HIDDEN, D_OUT)

    module = TeacherStudentPallas(params, update_rate=0.9)
    out_s, out_t = module.forward(x)
    jax.block_until_ready(out_s)
    jax.block_until_ready(out_t)

    assert out_s.shape == (B, D_OUT) and out_t.shape == (B, D_OUT)
    # Student and teacher start as identical deep-copies -> identical outputs.
    assert bool(jnp.allclose(out_s, out_t, atol=1e-5))

    # Cross-check against a pure-JAX f32 reference of the same MLP head.
    def ref_head(xf, p):
        h = xf @ p["w1"] + p["b1"]
        h = 0.5 * h * (1.0 + jax.lax.erf(h * _INV_SQRT2))
        return h @ p["w2"] + p["b2"]

    ref = ref_head(x.reshape(B, -1), params)
    tol = 5e-2 if jnp.dtype(module.compute_dtype) == jnp.dtype(jnp.bfloat16) else 1e-4
    assert bool(jnp.allclose(out_s, ref, atol=tol, rtol=tol))

    # Exercise the EMA update + re-fusion path once, then forward again.
    module.update_teacher_weight()
    out_s2, out_t2 = module.forward(x)
    jax.block_until_ready(out_s2)
    assert bool(jnp.allclose(out_s2, out_s, atol=1e-5))  # student unchanged

    print("KERNEL_OK")
</pallas_src>

<mosaic_0001>
module attributes {stable_mosaic.version = 11 : i64} {
  func.func @_fused_head_kernel(%arg0: i32, %arg1: i32, %arg2: memref<16x1024xbf16, #tpu.memory_space<vmem>>, %arg3: memref<1024x256xbf16, #tpu.memory_space<vmem>>, %arg4: memref<1x256xf32, #tpu.memory_space<vmem>>, %arg5: memref<128x64xbf16, #tpu.memory_space<vmem>>, %arg6: memref<128x64xbf16, #tpu.memory_space<vmem>>, %arg7: memref<1x64xf32, #tpu.memory_space<vmem>>, %arg8: memref<1x64xf32, #tpu.memory_space<vmem>>, %arg9: memref<16x64xf32, #tpu.memory_space<vmem>>, %arg10: memref<16x64xf32, #tpu.memory_space<vmem>>, %arg11: memref<16x256xbf16, #tpu.memory_space<vmem>>) attributes {dimension_semantics = [#tpu.dimension_semantics<parallel>, #tpu.dimension_semantics<arbitrary>], iteration_bounds = array<i64: 1, 1>, scalar_prefetch = 0 : i64, scratch_operands = 1 : i64, tpu.core_type = #tpu.core_type<tc>, window_params = [{transform_indices = @transform_0, window_bounds = array<i64: 16, 1024>}, {pipeline_mode = #tpu.pipeline_mode<synchronous>, transform_indices = @transform_1, window_bounds = array<i64: 1024, 256>}, {pipeline_mode = #tpu.pipeline_mode<synchronous>, transform_indices = @transform_2, window_bounds = array<i64: 1, 256>}, {transform_indices = @transform_3, window_bounds = array<i64: 128, 64>}, {transform_indices = @transform_4, window_bounds = array<i64: 128, 64>}, {transform_indices = @transform_5, window_bounds = array<i64: 1, 64>}, {transform_indices = @transform_6, window_bounds = array<i64: 1, 64>}, {transform_indices = @transform_7, window_bounds = array<i64: 16, 64>}, {transform_indices = @transform_8, window_bounds = array<i64: 16, 64>}]} {
    %c0_i32 = arith.constant 0 : i32
    %0 = arith.cmpi eq, %arg1, %c0_i32 : i32
    %1 = arith.extui %0 : i1 to i32
    %c0_i32_0 = arith.constant 0 : i32
    %2 = arith.cmpi ne, %1, %c0_i32_0 : i32
    scf.if %2 {
      %c0_16 = arith.constant 0 : index
      %c0_17 = arith.constant 0 : index
      %17 = vector.load %arg2[%c0_16, %c0_17] : memref<16x1024xbf16, #tpu.memory_space<vmem>>, vector<16x1024xbf16>
      %c0_18 = arith.constant 0 : index
      %c0_19 = arith.constant 0 : index
      %18 = vector.load %arg3[%c0_18, %c0_19] : memref<1024x256xbf16, #tpu.memory_space<vmem>>, vector<1024x256xbf16>
      %cst_20 = arith.constant dense<0.000000e+00> : vector<16x256xf32>
      %19 = tpu.matmul %17, %18, %cst_20 {dimension_numbers = #tpu.dot_dimension_numbers<[1], [0], [0], [1], [0, 0, 1, 1], [], []>} : vector<16x1024xbf16>, vector<1024x256xbf16>, vector<16x256xf32> -> vector<16x256xf32>
      %c0_21 = arith.constant 0 : index
      %c0_22 = arith.constant 0 : index
      %20 = vector.load %arg4[%c0_21, %c0_22] : memref<1x256xf32, #tpu.memory_space<vmem>>, vector<1x256xf32>
      %21 = vector.broadcast %20 : vector<1x256xf32> to vector<16x256xf32>
      %22 = arith.addf %19, %21 : vector<16x256xf32>
      %cst_23 = arith.constant 5.000000e-01 : f32
      %23 = vector.broadcast %cst_23 : f32 to vector<16x256xf32>
      %24 = arith.mulf %23, %22 : vector<16x256xf32>
      %cst_24 = arith.constant 0.707106769 : f32
      %25 = vector.broadcast %cst_24 : f32 to vector<16x256xf32>
      %26 = arith.mulf %22, %25 : vector<16x256xf32>
      %27 = math.erf %26 : vector<16x256xf32>
      %cst_25 = arith.constant 1.000000e+00 : f32
      %28 = vector.broadcast %cst_25 : f32 to vector<16x256xf32>
      %29 = arith.addf %28, %27 : vector<16x256xf32>
      %30 = arith.mulf %24, %29 : vector<16x256xf32>
      %31 = arith.truncf %30 : vector<16x256xf32> to vector<16x256xbf16>
      %c0_26 = arith.constant 0 : index
      %c0_27 = arith.constant 0 : index
      %32 = vector.load %arg11[%c0_26, %c0_27] : memref<16x256xbf16, #tpu.memory_space<vmem>>, vector<16x256xbf16>
      tpu.vector_store %arg11[%c0_26, %c0_27], %31 {strides = array<i32>} : memref<16x256xbf16, #tpu.memory_space<vmem>>, vector<16x256xbf16>,
    } else {
    }
    %c0 = arith.constant 0 : index
    %c0_1 = arith.constant 0 : index
    %3 = vector.load %arg11[%c0, %c0_1] : memref<16x256xbf16, #tpu.memory_space<vmem>>, vector<16x128xbf16>
    %c0_2 = arith.constant 0 : index
    %c128 = arith.constant 128 : index
    %4 = vector.load %arg11[%c0_2, %c128] : memref<16x256xbf16, #tpu.memory_space<vmem>>, vector<16x128xbf16>
    %c0_3 = arith.constant 0 : index
    %c0_4 = arith.constant 0 : index
    %5 = vector.load %arg5[%c0_3, %c0_4] : memref<128x64xbf16, #tpu.memory_space<vmem>>, vector<128x64xbf16>
    %cst = arith.constant dense<0.000000e+00> : vector<16x64xf32>
    %6 = tpu.matmul %3, %5, %cst {dimension_numbers = #tpu.dot_dimension_numbers<[1], [0], [0], [1], [0, 0, 1, 1], [], []>} : vector<16x128xbf16>, vector<128x64xbf16>, vector<16x64xf32> -> vector<16x64xf32>
    %c0_5 = arith.constant 0 : index
    %c0_6 = arith.constant 0 : index
    %7 = vector.load %arg7[%c0_5, %c0_6] : memref<1x64xf32, #tpu.memory_space<vmem>>, vector<1x64xf32>
    %8 = vector.broadcast %7 : vector<1x64xf32> to vector<16x64xf32>
    %9 = arith.addf %6, %8 : vector<16x64xf32>
    %c0_7 = arith.constant 0 : index
    %c0_8 = arith.constant 0 : index
    %10 = vector.load %arg9[%c0_7, %c0_8] : memref<16x64xf32, #tpu.memory_space<vmem>>, vector<16x64xf32>
    tpu.vector_store %arg9[%c0_7, %c0_8], %9 {strides = array<i32>} : memref<16x64xf32, #tpu.memory_space<vmem>>, vector<16x64xf32>,
    %c0_9 = arith.constant 0 : index
    %c0_10 = arith.constant 0 : index
    %11 = vector.load %arg6[%c0_9, %c0_10] : memref<128x64xbf16, #tpu.memory_space<vmem>>, vector<128x64xbf16>
    %cst_11 = arith.constant dense<0.000000e+00> : vector<16x64xf32>
    %12 = tpu.matmul %4, %11, %cst_11 {dimension_numbers = #tpu.dot_dimension_numbers<[1], [0], [0], [1], [0, 0, 1, 1], [], []>} : vector<16x128xbf16>, vector<128x64xbf16>, vector<16x64xf32> -> vector<16x64xf32>
    %c0_12 = arith.constant 0 : index
    %c0_13 = arith.constant 0 : index
    %13 = vector.load %arg8[%c0_12, %c0_13] : memref<1x64xf32, #tpu.memory_space<vmem>>, vector<1x64xf32>
    %14 = vector.broadcast %13 : vector<1x64xf32> to vector<16x64xf32>
    %15 = arith.addf %12, %14 : vector<16x64xf32>
    %c0_14 = arith.constant 0 : index
    %c0_15 = arith.constant 0 : index
    %16 = vector.load %arg10[%c0_14, %c0_15] : memref<16x64xf32, #tpu.memory_space<vmem>>, vector<16x64xf32>
    tpu.vector_store %arg10[%c0_14, %c0_15], %15 {strides = array<i32>} : memref<16x64xf32, #tpu.memory_space<vmem>>, vector<16x64xf32>,
    return
  }
  func.func @transform_0(%arg0: i32, %arg1: i32) -> (i32, i32) {
    %c0_i32 = arith.constant 0 : i32
    %c0_i32_0 = arith.constant 0 : i32
    return %arg0, %c0_i32 : i32, i32
  }
  func.func @transform_1(%arg0: i32, %arg1: i32) -> (i32, i32) {
    %c0_i32 = arith.constant 0 : i32
    %c0_i32_0 = arith.constant 0 : i32
    %c0_i32_1 = arith.constant 0 : i32
    return %c0_i32, %c0_i32_0 : i32, i32
  }
  func.func @transform_2(%arg0: i32, %arg1: i32) -> (i32, i32) {
    %c0_i32 = arith.constant 0 : i32
    %c0_i32_0 = arith.constant 0 : i32
    %c0_i32_1 = arith.constant 0 : i32
    return %c0_i32, %c0_i32_0 : i32, i32
  }
  func.func @transform_3(%arg0: i32, %arg1: i32) -> (i32, i32) {
    %c0_i32 = arith.constant 0 : i32
    %c0_i32_0 = arith.constant 0 : i32
    return %c0_i32, %arg1 : i32, i32
  }
  func.func @transform_4(%arg0: i32, %arg1: i32) -> (i32, i32) {
    %c0_i32 = arith.constant 0 : i32
    %c0_i32_0 = arith.constant 0 : i32
    return %c0_i32, %arg1 : i32, i32
  }
  func.func @transform_5(%arg0: i32, %arg1: i32) -> (i32, i32) {
    %c0_i32 = arith.constant 0 : i32
    %c0_i32_0 = arith.constant 0 : i32
    return %c0_i32, %arg1 : i32, i32
  }
  func.func @transform_6(%arg0: i32, %arg1: i32) -> (i32, i32) {
    %c0_i32 = arith.constant 0 : i32
    %c0_i32_0 = arith.constant 0 : i32
    return %c0_i32, %arg1 : i32, i32
  }
  func.func @transform_7(%arg0: i32, %arg1: i32) -> (i32, i32) {
    %c0_i32 = arith.constant 0 : i32
    return %arg0, %arg1 : i32, i32
  }
  func.func @transform_8(%arg0: i32, %arg1: i32) -> (i32, i32) {
    %c0_i32 = arith.constant 0 : i32
    return %arg0, %arg1 : i32, i32
  }
}

</mosaic_0001>

<llo_original>
// kernel: _teacher_student_forward.1
$region0: #{_teacher_student_forward.1}
  #allocation0 [shape = 'u32[]', space=smem, size = 0x4, offset = 0x4, fixed_abs, tag = 'smem constant byte address 0x4 - core index']
  #allocation1 [shape = 'u32[144,128]{1,0:T(1,128)}', space=vmem, size = 0x12000, scoped, tag = 'internal scratch']
  #allocation2 [shape = 'bf16[16,256]{1,0:T(16,128)(2,1)}', space=vmem, size = 0x2000, scoped, tag = 'scratch operand']
  %s0 = inlined_call_operand.vmem [shape: bf16[16,1024], index: 0, kind: input, shape index: {}]
  %s1 = inlined_call_operand.hbm [shape: bf16[1024,256], index: 1, kind: input, shape index: {}]
  %s2 = inlined_call_operand.vmem [shape: f32[1,256], index: 2, kind: input, shape index: {}]
  %s3 = inlined_call_operand.vmem [shape: bf16[128,64], index: 3, kind: input, shape index: {}]
  %s4 = inlined_call_operand.vmem [shape: bf16[128,64], index: 4, kind: input, shape index: {}]
  %s5 = inlined_call_operand.vmem [shape: f32[1,64], index: 5, kind: input, shape index: {}]
  %s6 = inlined_call_operand.vmem [shape: f32[1,64], index: 6, kind: input, shape index: {}]
  %s7 = inlined_call_operand.vmem [shape: f32[16,64], index: 7, kind: output, shape index: {0}]
  %s8 = inlined_call_operand.vmem [shape: f32[16,64], index: 8, kind: output, shape index: {1}]
  %9 = xla_tuple %s7, %s8
  %s10 = sld [smem:[#allocation0]]
  $region54: #{_teacher_student_forward.1} parent=0
    _
  %s12 = ssub.s32 1, %s10
  %s13 = scalar_select 0, %s12, %s10
  $region1: #{_teacher_student_forward.1} parent=0
    #allocation3 [shape = 'u8[524288]{0}', space=vmem, size = 0x80000, scoped, tag = 'input window, operand 1, single buffered']
    #allocation4 [shape = 's32[1]{0}', space=sflag, size = 0x4, scoped, tag = 'scoped memory for _teacher_student_forward.1']
    %14 = vsyncpa [#allocation4], 0
    // Predicated region
    $region2: #{_teacher_student_forward.1} parent=1 // pred_check
      _
    $region3: #{_teacher_student_forward.1} parent=1 // pred_check_branch
      %16 = sbr.rel (0) target = $region5
    $region4: #{_teacher_student_forward.1} parent=1 // pred_region
      _
    $region5: #{_teacher_student_forward.1} parent=1 // pred_fallthru
      _
    // Predicated region
    $region6: #{_teacher_student_forward.1} parent=1 // pred_check
      _
    $region7: #{_teacher_student_forward.1} parent=1 // pred_check_branch
      %18 = sbr.rel (0) target = $region9
    $region8: #{_teacher_student_forward.1} parent=1 // pred_region
      %s20 = ssub.s32 16384, 16384
      %21 = vsyncadd [#allocation4], %s20
      %s22 = sshll.u32 [#allocation3], 4
      %s23 = int_to_ptr.vmem [resolvable:$true] %s22
      %28 = dma.hbm_to_vmem [thread:$0]  %s1, 16384, %s23, [#allocation4], 128, 128, 8
    $region9: #{_teacher_student_forward.1} parent=1 // pred_fallthru
      _
    // Predicated region
    $region10: #{_teacher_student_forward.1} parent=1 // pred_check
      _
    $region11: #{_teacher_student_forward.1} parent=1 // pred_check_branch
      %30 = sbr.rel (0) target = $region13
    $region12: #{_teacher_student_forward.1} parent=1 // pred_region
      _
    $region13: #{_teacher_student_forward.1} parent=1 // pred_fallthru
      _
    // Predicated region
    $region14: #{_teacher_student_forward.1} parent=1 // pred_check
      _
    $region15: #{_teacher_student_forward.1} parent=1 // pred_check_branch
      %32 = sbr.rel (0) target = $region17
    $region16: #{_teacher_student_forward.1} parent=1 // pred_region
      _
    $region17: #{_teacher_student_forward.1} parent=1 // pred_fallthru
      _
    // Predicated region
    $region18: #{_teacher_student_forward.1} parent=1 // pred_check
      _
    $region19: #{_teacher_student_forward.1} parent=1 // pred_check_branch
      %34 = sbr.rel (0) target = $region21
    $region20: #{_teacher_student_forward.1} parent=1 // pred_region
      _
    $region21: #{_teacher_student_forward.1} parent=1 // pred_fallthru
      _
    // Predicated region
    $region22: #{_teacher_student_forward.1} parent=1 // pred_check
      _
    $region23: #{_teacher_student_forward.1} parent=1 // pred_check_branch
      %36 = sbr.rel (0) target = $region25
    $region24: #{_teacher_student_forward.1} parent=1 // pred_region
      _
    $region25: #{_teacher_student_forward.1} parent=1 // pred_fallthru
      _
    // Predicated region
    $region26: #{_teacher_student_forward.1} parent=1 // pred_check
      _
    $region27: #{_teacher_student_forward.1} parent=1 // pred_check_branch
      %38 = sbr.rel (0) target = $region29
    $region28: #{_teacher_student_forward.1} parent=1 // pred_region
      _
    $region29: #{_teacher_student_forward.1} parent=1 // pred_fallthru
      _
    // Predicated region
    $region30: #{_teacher_student_forward.1} parent=1 // pred_check
      _
    $region31: #{_teacher_student_forward.1} parent=1 // pred_check_branch
      %40 = sbr.rel (0) target = $region33
    $region32: #{_teacher_student_forward.1} parent=1 // pred_region
      %41 = dma.done [#allocation4], 16384
    $region33: #{_teacher_student_forward.1} parent=1 // pred_fallthru
      _
    %p43 = scmp.eq.s32.totalorder 0, 0
    // Predicated region
    $region34: #{_teacher_student_forward.1} parent=1 // pred_check
      %p44 = pneg %p43
    $region35: #{_teacher_student_forward.1} parent=1 // pred_check_branch
      %46 = sbr.rel (%p44) target = $region37
    $region36: #{_teacher_student_forward.1} parent=1 // pred_region
      %v47 = vld [vmem:[%s0] sm:$0xff]
      %v48 = vld [vmem:[%s0 + $0x8] sm:$0xff]
      %v49 = vld [vmem:[%s0 + $0x10] sm:$0xff]
      %v50 = vld [vmem:[%s0 + $0x18] sm:$0xff]
      %v51 = vld [vmem:[%s0 + $0x20] sm:$0xff]
      %v52 = vld [vmem:[%s0 + $0x28] sm:$0xff]
      %v53 = vld [vmem:[%s0 + $0x30] sm:$0xff]
      %v54 = vld [vmem:[%s0 + $0x38] sm:$0xff]
      %v55 = vld [vmem:[#allocation3] sm:$0xff]
      %v56 = vld [vmem:[#allocation3 + $0x8] sm:$0xff]
      %v57 = vld [vmem:[#allocation3 + $0x10] sm:$0xff]
      %v58 = vld [vmem:[#allocation3 + $0x18] sm:$0xff]
      %v59 = vld [vmem:[#allocation3 + $0x20] sm:$0xff]
      %v60 = vld [vmem:[#allocation3 + $0x28] sm:$0xff]
      %v61 = vld [vmem:[#allocation3 + $0x30] sm:$0xff]
      %v62 = vld [vmem:[#allocation3 + $0x38] sm:$0xff]
      %v63 = vld [vmem:[#allocation3 + $0x40] sm:$0xff]
      %v64 = vld [vmem:[#allocation3 + $0x48] sm:$0xff]
      %v65 = vld [vmem:[#allocation3 + $0x50] sm:$0xff]
      %v66 = vld [vmem:[#allocation3 + $0x58] sm:$0xff]
      %v67 = vld [vmem:[#allocation3 + $0x60] sm:$0xff]
      %v68 = vld [vmem:[#allocation3 + $0x68] sm:$0xff]
      %v69 = vld [vmem:[#allocation3 + $0x70] sm:$0xff]
      %v70 = vld [vmem:[#allocation3 + $0x78] sm:$0xff]
      %v71 = vld [vmem:[#allocation3 + $0x80] sm:$0xff]
      %v72 = vld [vmem:[#allocation3 + $0x88] sm:$0xff]
      %v73 = vld [vmem:[#allocation3 + $0x90] sm:$0xff]
      %v74 = vld [vmem:[#allocation3 + $0x98] sm:$0xff]
      %v75 = vld [vmem:[#allocation3 + $0xa0] sm:$0xff]
      %v76 = vld [vmem:[#allocation3 + $0xa8] sm:$0xff]
      %v77 = vld [vmem:[#allocation3 + $0xb0] sm:$0xff]
      %v78 = vld [vmem:[#allocation3 + $0xb8] sm:$0xff]
      %v79 = vld [vmem:[#allocation3 + $0xc0] sm:$0xff]
      %v80 = vld [vmem:[#allocation3 + $0xc8] sm:$0xff]
      %v81 = vld [vmem:[#allocation3 + $0xd0] sm:$0xff]
      %v82 = vld [vmem:[#allocation3 + $0xd8] sm:$0xff]
      %v83 = vld [vmem:[#allocation3 + $0xe0] sm:$0xff]
      %v84 = vld [vmem:[#allocation3 + $0xe8] sm:$0xff]
      %v85 = vld [vmem:[#allocation3 + $0xf0] sm:$0xff]
      %v86 = vld [vmem:[#allocation3 + $0xf8] sm:$0xff]
      %v87 = vld [vmem:[#allocation3 + $0x100] sm:$0xff]
      %v88 = vld [vmem:[#allocation3 + $0x108] sm:$0xff]
      %v89 = vld [vmem:[#allocation3 + $0x110] sm:$0xff]
      %v90 = vld [vmem:[#allocation3 + $0x118] sm:$0xff]
      %v91 = vld [vmem:[#allocation3 + $0x120] sm:$0xff]
      %v92 = vld [vmem:[#allocation3 + $0x128] sm:$0xff]
      %v93 = vld [vmem:[#allocation3 + $0x130] sm:$0xff]
      %v94 = vld [vmem:[#allocation3 + $0x138] sm:$0xff]
      %v95 = vld [vmem:[#allocation3 + $0x140] sm:$0xff]
      %v96 = vld [vmem:[#allocation3 + $0x148] sm:$0xff]
      %v97 = vld [vmem:[#allocation3 + $0x150] sm:$0xff]
      %v98 = vld [vmem:[#allocation3 + $0x158] sm:$0xff]
      %v99 = vld [vmem:[#allocation3 + $0x160] sm:$0xff]
      %v100 = vld [vmem:[#allocation3 + $0x168] sm:$0xff]
      %v101 = vld [vmem:[#allocation3 + $0x170] sm:$0xff]
      %v102 = vld [vmem:[#allocation3 + $0x178] sm:$0xff]
      %v103 = vld [vmem:[#allocation3 + $0x180] sm:$0xff]
      %v104 = vld [vmem:[#allocation3 + $0x188] sm:$0xff]
      %v105 = vld [vmem:[#allocation3 + $0x190] sm:$0xff]
      %v106 = vld [vmem:[#allocation3 + $0x198] sm:$0xff]
      %v107 = vld [vmem:[#allocation3 + $0x1a0] sm:$0xff]
      %v108 = vld [vmem:[#allocation3 + $0x1a8] sm:$0xff]
      %v109 = vld [vmem:[#allocation3 + $0x1b0] sm:$0xff]
      %v110 = vld [vmem:[#allocation3 + $0x1b8] sm:$0xff]
      %v111 = vld [vmem:[#allocation3 + $0x1c0] sm:$0xff]
      %v112 = vld [vmem:[#allocation3 + $0x1c8] sm:$0xff]
      %v113 = vld [vmem:[#allocation3 + $0x1d0] sm:$0xff]
      %v114 = vld [vmem:[#allocation3 + $0x1d8] sm:$0xff]
      %v115 = vld [vmem:[#allocation3 + $0x1e0] sm:$0xff]
      %v116 = vld [vmem:[#allocation3 + $0x1e8] sm:$0xff]
      %v117 = vld [vmem:[#allocation3 + $0x1f0] sm:$0xff]
      %v118 = vld [vmem:[#allocation3 + $0x1f8] sm:$0xff]
      %v119 = vld [vmem:[#allocation3 + $0x200] sm:$0xff]
      %v120 = vld [vmem:[#allocation3 + $0x208] sm:$0xff]
      %v121 = vld [vmem:[#allocation3 + $0x210] sm:$0xff]
      %v122 = vld [vmem:[#allocation3 + $0x218] sm:$0xff]
      %v123 = vld [vmem:[#allocation3 + $0x220] sm:$0xff]
      %v124 = vld [vmem:[#allocation3 + $0x228] sm:$0xff]
      %v125 = vld [vmem:[#allocation3 + $0x230] sm:$0xff]
      %v126 = vld [vmem:[#allocation3 + $0x238] sm:$0xff]
      %v127 = vld [vmem:[#allocation3 + $0x240] sm:$0xff]
      %v128 = vld [vmem:[#allocation3 + $0x248] sm:$0xff]
      %v129 = vld [vmem:[#allocation3 + $0x250] sm:$0xff]
      %v130 = vld [vmem:[#allocation3 + $0x258] sm:$0xff]
      %v131 = vld [vmem:[#allocation3 + $0x260] sm:$0xff]
      %v132 = vld [vmem:[#allocation3 + $0x268] sm:$0xff]
      %v133 = vld [vmem:[#allocation3 + $0x270] sm:$0xff]
      %v134 = vld [vmem:[#allocation3 + $0x278] sm:$0xff]
      %v135 = vld [vmem:[#allocation3 + $0x280] sm:$0xff]
      %v136 = vld [vmem:[#allocation3 + $0x288] sm:$0xff]
      %v137 = vld [vmem:[#allocation3 + $0x290] sm:$0xff]
      %v138 = vld [vmem:[#allocation3 + $0x298] sm:$0xff]
      %v139 = vld [vmem:[#allocation3 + $0x2a0] sm:$0xff]
      %v140 = vld [vmem:[#allocation3 + $0x2a8] sm:$0xff]
      %v141 = vld [vmem:[#allocation3 + $0x2b0] sm:$0xff]
      %v142 = vld [vmem:[#allocation3 + $0x2b8] sm:$0xff]
      %v143 = vld [vmem:[#allocation3 + $0x2c0] sm:$0xff]
      %v144 = vld [vmem:[#allocation3 + $0x2c8] sm:$0xff]
      %v145 = vld [vmem:[#allocation3 + $0x2d0] sm:$0xff]
      %v146 = vld [vmem:[#allocation3 + $0x2d8] sm:$0xff]
      %v147 = vld [vmem:[#allocation3 + $0x2e0] sm:$0xff]
      %v148 = vld [vmem:[#allocation3 + $0x2e8] sm:$0xff]
      %v149 = vld [vmem:[#allocation3 + $0x2f0] sm:$0xff]
      %v150 = vld [vmem:[#allocation3 + $0x2f8] sm:$0xff]
      %v151 = vld [vmem:[#allocation3 + $0x300] sm:$0xff]
      %v152 = vld [vmem:[#allocation3 + $0x308] sm:$0xff]
      %v153 = vld [vmem:[#allocation3 + $0x310] sm:$0xff]
      %v154 = vld [vmem:[#allocation3 + $0x318] sm:$0xff]
      %v155 = vld [vmem:[#allocation3 + $0x320] sm:$0xff]
      %v156 = vld [vmem:[#allocation3 + $0x328] sm:$0xff]
      %v157 = vld [vmem:[#allocation3 + $0x330] sm:$0xff]
      %v158 = vld [vmem:[#allocation3 + $0x338] sm:$0xff]
      %v159 = vld [vmem:[#allocation3 + $0x340] sm:$0xff]
      %v160 = vld [vmem:[#allocation3 + $0x348] sm:$0xff]
      %v161 = vld [vmem:[#allocation3 + $0x350] sm:$0xff]
      %v162 = vld [vmem:[#allocation3 + $0x358] sm:$0xff]
      %v163 = vld [vmem:[#allocation3 + $0x360] sm:$0xff]
      %v164 = vld [vmem:[#allocation3 + $0x368] sm:$0xff]
      %v165 = vld [vmem:[#allocation3 + $0x370] sm:$0xff]
      %v166 = vld [vmem:[#allocation3 + $0x378] sm:$0xff]
      %v167 = vld [vmem:[#allocation3 + $0x380] sm:$0xff]
      %v168 = vld [vmem:[#allocation3 + $0x388] sm:$0xff]
      %v169 = vld [vmem:[#allocation3 + $0x390] sm:$0xff]
      %v170 = vld [vmem:[#allocation3 + $0x398] sm:$0xff]
      %v171 = vld [vmem:[#allocation3 + $0x3a0] sm:$0xff]
      %v172 = vld [vmem:[#allocation3 + $0x3a8] sm:$0xff]
      %v173 = vld [vmem:[#allocation3 + $0x3b0] sm:$0xff]
      %v174 = vld [vmem:[#allocation3 + $0x3b8] sm:$0xff]
      %v175 = vld [vmem:[#allocation3 + $0x3c0] sm:$0xff]
      %v176 = vld [vmem:[#allocation3 + $0x3c8] sm:$0xff]
      %v177 = vld [vmem:[#allocation3 + $0x3d0] sm:$0xff]
      %v178 = vld [vmem:[#allocation3 + $0x3d8] sm:$0xff]
      %v179 = vld [vmem:[#allocation3 + $0x3e0] sm:$0xff]
      %v180 = vld [vmem:[#allocation3 + $0x3e8] sm:$0xff]
      %v181 = vld [vmem:[#allocation3 + $0x3f0] sm:$0xff]
      %v182 = vld [vmem:[#allocation3 + $0x3f8] sm:$0xff]
      %v183 = vld [vmem:[%s2] sm:$0x3]
      %v185 = vlaneseq
      %v186 = vshrl.u32 %v185, 7
      %v187 = vsub.s32 0, %v186
      %v188 = vrot.slane %v183, %v187
      %v189 = vlaneseq
      %v190 = vshrl.u32 %v189, 7
      %v191 = vsub.s32 1, %v190
      %v192 = vrot.slane %v183, %v191
      %v203 = vunpack.c.l.b16 %v47
      %v204 = vunpack.c.h.b16 %v47
      %v205 = vunpack.c.l.b16 %v48
      %v206 = vunpack.c.h.b16 %v48
      %v207 = vunpack.c.l.b16 %v49
      %v208 = vunpack.c.h.b16 %v49
      %v209 = vunpack.c.l.b16 %v50
      %v210 = vunpack.c.h.b16 %v50
      %v211 = vunpack.c.l.b16 %v51
      %v212 = vunpack.c.h.b16 %v51
      %v213 = vunpack.c.l.b16 %v52
      %v214 = vunpack.c.h.b16 %v52
      %v215 = vunpack.c.l.b16 %v53
      %v216 = vunpack.c.h.b16 %v53
      %v217 = vunpack.c.l.b16 %v54
      %v218 = vunpack.c.h.b16 %v54
      %v219 = vpack.c.b16 %v211, %v203
      %v220 = vpack.c.b16 %v212, %v204
      %v221 = vpack.c.b16 %v213, %v205
      %v222 = vpack.c.b16 %v214, %v206
      %v223 = vpack.c.b16 %v215, %v207
      %v224 = vpack.c.b16 %v216, %v208
      %v225 = vpack.c.b16 %v217, %v209
      %v226 = vpack.c.b16 %v218, %v210
      %v363 = vunpack.c.l.b16 %v55
      %v364 = vunpack.c.h.b16 %v55
      %v365 = vunpack.c.l.b16 %v56
      %v366 = vunpack.c.h.b16 %v56
      %v367 = vunpack.c.l.b16 %v57
      %v368 = vunpack.c.h.b16 %v57
      %v369 = vunpack.c.l.b16 %v58
      %v370 = vunpack.c.h.b16 %v58
      %v371 = vunpack.c.l.b16 %v59
      %v372 = vunpack.c.h.b16 %v59
      %v373 = vunpack.c.l.b16 %v60
      %v374 = vunpack.c.h.b16 %v60
      %v375 = vunpack.c.l.b16 %v61
      %v376 = vunpack.c.h.b16 %v61
      %v377 = vunpack.c.l.b16 %v62
      %v378 = vunpack.c.h.b16 %v62
      %v379 = vunpack.c.l.b16 %v63
      %v380 = vunpack.c.h.b16 %v63
      %v381 = vunpack.c.l.b16 %v64
      %v382 = vunpack.c.h.b16 %v64
      %v383 = vunpack.c.l.b16 %v65
      %v384 = vunpack.c.h.b16 %v65
      %v385 = vunpack.c.l.b16 %v66
      %v386 = vunpack.c.h.b16 %v66
      %v387 = vunpack.c.l.b16 %v67
      %v388 = vunpack.c.h.b16 %v67
      %v389 = vunpack.c.l.b16 %v68
      %v390 = vunpack.c.h.b16 %v68
      %v391 = vunpack.c.l.b16 %v69
      %v392 = vunpack.c.h.b16 %v69
      %v393 = vunpack.c.l.b16 %v70
      %v394 = vunpack.c.h.b16 %v70
      %v395 = vunpack.c.l.b16 %v71
      %v396 = vunpack.c.h.b16 %v71
      %v397 = vunpack.c.l.b16 %v72
      %v398 = vunpack.c.h.b16 %v72
      %v399 = vunpack.c.l.b16 %v73
      %v400 = vunpack.c.h.b16 %v73
      %v401 = vunpack.c.l.b16 %v74
      %v402 = vunpack.c.h.b16 %v74
      %v403 = vunpack.c.l.b16 %v75
      %v404 = vunpack.c.h.b16 %v75
      %v405 = vunpack.c.l.b16 %v76
      %v406 = vunpack.c.h.b16 %v76
      %v407 = vunpack.c.l.b16 %v77
      %v408 = vunpack.c.h.b16 %v77
      %v409 = vunpack.c.l.b16 %v78
      %v410 = vunpack.c.h.b16 %v78
      %v411 = vunpack.c.l.b16 %v79
      %v412 = vunpack.c.h.b16 %v79
      %v413 = vunpack.c.l.b16 %v80
      %v414 = vunpack.c.h.b16 %v80
      %v415 = vunpack.c.l.b16 %v81
      %v416 = vunpack.c.h.b16 %v81
      %v417 = vunpack.c.l.b16 %v82
      %v418 = vunpack.c.h.b16 %v82
      %v419 = vunpack.c.l.b16 %v83
      %v420 = vunpack.c.h.b16 %v83
      %v421 = vunpack.c.l.b16 %v84
      %v422 = vunpack.c.h.b16 %v84
      %v423 = vunpack.c.l.b16 %v85
      %v424 = vunpack.c.h.b16 %v85
      %v425 = vunpack.c.l.b16 %v86
      %v426 = vunpack.c.h.b16 %v86
      %v427 = vunpack.c.l.b16 %v87
      %v428 = vunpack.c.h.b16 %v87
      %v429 = vunpack.c.l.b16 %v88
      %v430 = vunpack.c.h.b16 %v88
      %v431 = vunpack.c.l.b16 %v89
      %v432 = vunpack.c.h.b16 %v89
      %v433 = vunpack.c.l.b16 %v90
      %v434 = vunpack.c.h.b16 %v90
      %v435 = vunpack.c.l.b16 %v91
      %v436 = vunpack.c.h.b16 %v91
      %v437 = vunpack.c.l.b16 %v92
      %v438 = vunpack.c.h.b16 %v92
      %v439 = vunpack.c.l.b16 %v93
      %v440 = vunpack.c.h.b16 %v93
      %v441 = vunpack.c.l.b16 %v94
      %v442 = vunpack.c.h.b16 %v94
      %v443 = vunpack.c.l.b16 %v95
      %v444 = vunpack.c.h.b16 %v95
      %v445 = vunpack.c.l.b16 %v96
      %v446 = vunpack.c.h.b16 %v96
      %v447 = vunpack.c.l.b16 %v97
      %v448 = vunpack.c.h.b16 %v97
      %v449 = vunpack.c.l.b16 %v98
      %v450 = vunpack.c.h.b16 %v98
      %v451 = vunpack.c.l.b16 %v99
      %v452 = vunpack.c.h.b16 %v99
      %v453 = vunpack.c.l.b16 %v100
      %v454 = vunpack.c.h.b16 %v100
      %v455 = vunpack.c.l.b16 %v101
      %v456 = vunpack.c.h.b16 %v101
      %v457 = vunpack.c.l.b16 %v102
      %v458 = vunpack.c.h.b16 %v102
      %v459 = vunpack.c.l.b16 %v103
      %v460 = vunpack.c.h.b16 %v103
      %v461 = vunpack.c.l.b16 %v104
      %v462 = vunpack.c.h.b16 %v104
      %v463 = vunpack.c.l.b16 %v105
      %v464 = vunpack.c.h.b16 %v105
      %v465 = vunpack.c.l.b16 %v106
      %v466 = vunpack.c.h.b16 %v106
      %v467 = vunpack.c.l.b16 %v107
      %v468 = vunpack.c.h.b16 %v107
      %v469 = vunpack.c.l.b16 %v108
      %v470 = vunpack.c.h.b16 %v108
      %v471 = vunpack.c.l.b16 %v109
      %v472 = vunpack.c.h.b16 %v109
      %v473 = vunpack.c.l.b16 %v110
      %v474 = vunpack.c.h.b16 %v110
      %v475 = vunpack.c.l.b16 %v111
      %v476 = vunpack.c.h.b16 %v111
      %v477 = vunpack.c.l.b16 %v112
      %v478 = vunpack.c.h.b16 %v112
      %v479 = vunpack.c.l.b16 %v113
      %v480 = vunpack.c.h.b16 %v113
      %v481 = vunpack.c.l.b16 %v114
      %v482 = vunpack.c.h.b16 %v114
      %v483 = vunpack.c.l.b16 %v115
      %v484 = vunpack.c.h.b16 %v115
      %v485 = vunpack.c.l.b16 %v116
      %v486 = vunpack.c.h.b16 %v116
      %v487 = vunpack.c.l.b16 %v117
      %v488 = vunpack.c.h.b16 %v117
      %v489 = vunpack.c.l.b16 %v118
      %v490 = vunpack.c.h.b16 %v118
      %v491 = vunpack.c.l.b16 %v119
      %v492 = vunpack.c.h.b16 %v119
      %v493 = vunpack.c.l.b16 %v120
      %v494 = vunpack.c.h.b16 %v120
      %v495 = vunpack.c.l.b16 %v121
      %v496 = vunpack.c.h.b16 %v121
      %v497 = vunpack.c.l.b16 %v122
      %v498 = vunpack.c.h.b16 %v122
      %v499 = vunpack.c.l.b16 %v123
      %v500 = vunpack.c.h.b16 %v123
      %v501 = vunpack.c.l.b16 %v124
      %v502 = vunpack.c.h.b16 %v124
      %v503 = vunpack.c.l.b16 %v125
      %v504 = vunpack.c.h.b16 %v125
      %v505 = vunpack.c.l.b16 %v126
      %v506 = vunpack.c.h.b16 %v126
      %v507 = vunpack.c.l.b16 %v127
      %v508 = vunpack.c.h.b16 %v127
      %v509 = vunpack.c.l.b16 %v128
      %v510 = vunpack.c.h.b16 %v128
      %v511 = vunpack.c.l.b16 %v129
      %v512 = vunpack.c.h.b16 %v129
      %v513 = vunpack.c.l.b16 %v130
      %v514 = vunpack.c.h.b16 %v130
      %v515 = vunpack.c.l.b16 %v131
      %v516 = vunpack.c.h.b16 %v131
      %v517 = vunpack.c.l.b16 %v132
      %v518 = vunpack.c.h.b16 %v132
      %v519 = vunpack.c.l.b16 %v133
      %v520 = vunpack.c.h.b16 %v133
      %v521 = vunpack.c.l.b16 %v134
      %v522 = vunpack.c.h.b16 %v134
      %v523 = vunpack.c.l.b16 %v135
      %v524 = vunpack.c.h.b16 %v135
      %v525 = vunpack.c.l.b16 %v136
      %v526 = vunpack.c.h.b16 %v136
      %v527 = vunpack.c.l.b16 %v137
      %v528 = vunpack.c.h.b16 %v137
      %v529 = vunpack.c.l.b16 %v138
      %v530 = vunpack.c.h.b16 %v138
      %v531 = vunpack.c.l.b16 %v139
      %v532 = vunpack.c.h.b16 %v139
      %v533 = vunpack.c.l.b16 %v140
      %v534 = vunpack.c.h.b16 %v140
      %v535 = vunpack.c.l.b16 %v141
      %v536 = vunpack.c.h.b16 %v141
      %v537 = vunpack.c.l.b16 %v142
      %v538 = vunpack.c.h.b16 %v142
      %v539 = vunpack.c.l.b16 %v143
      %v540 = vunpack.c.h.b16 %v143
      %v541 = vunpack.c.l.b16 %v144
      %v542 = vunpack.c.h.b16 %v144
      %v543 = vunpack.c.l.b16 %v145
      %v544 = vunpack.c.h.b16 %v145
      %v545 = vunpack.c.l.b16 %v146
      %v546 = vunpack.c.h.b16 %v146
      %v547 = vunpack.c.l.b16 %v147
      %v548 = vunpack.c.h.b16 %v147
      %v549 = vunpack.c.l.b16 %v148
      %v550 = vunpack.c.h.b16 %v148
      %v551 = vunpack.c.l.b16 %v149
      %v552 = vunpack.c.h.b16 %v149
      %v553 = vunpack.c.l.b16 %v150
      %v554 = vunpack.c.h.b16 %v150
      %v555 = vunpack.c.l.b16 %v151
      %v556 = vunpack.c.h.b16 %v151
      %v557 = vunpack.c.l.b16 %v152
      %v558 = vunpack.c.h.b16 %v152
      %v559 = vunpack.c.l.b16 %v153
      %v560 = vunpack.c.h.b16 %v153
      %v561 = vunpack.c.l.b16 %v154
      %v562 = vunpack.c.h.b16 %v154
      %v563 = vunpack.c.l.b16 %v155
      %v564 = vunpack.c.h.b16 %v155
      %v565 = vunpack.c.l.b16 %v156
      %v566 = vunpack.c.h.b16 %v156
      %v567 = vunpack.c.l.b16 %v157
      %v568 = vunpack.c.h.b16 %v157
      %v569 = vunpack.c.l.b16 %v158
      %v570 = vunpack.c.h.b16 %v158
      %v571 = vunpack.c.l.b16 %v159
      %v572 = vunpack.c.h.b16 %v159
      %v573 = vunpack.c.l.b16 %v160
      %v574 = vunpack.c.h.b16 %v160
      %v575 = vunpack.c.l.b16 %v161
      %v576 = vunpack.c.h.b16 %v161
      %v577 = vunpack.c.l.b16 %v162
      %v578 = vunpack.c.h.b16 %v162
      %v579 = vunpack.c.l.b16 %v163
      %v580 = vunpack.c.h.b16 %v163
      %v581 = vunpack.c.l.b16 %v164
      %v582 = vunpack.c.h.b16 %v164
      %v583 = vunpack.c.l.b16 %v165
      %v584 = vunpack.c.h.b16 %v165
      %v585 = vunpack.c.l.b16 %v166
      %v586 = vunpack.c.h.b16 %v166
      %v587 = vunpack.c.l.b16 %v167
      %v588 = vunpack.c.h.b16 %v167
      %v589 = vunpack.c.l.b16 %v168
      %v590 = vunpack.c.h.b16 %v168
      %v591 = vunpack.c.l.b16 %v169
      %v592 = vunpack.c.h.b16 %v169
      %v593 = vunpack.c.l.b16 %v170
      %v594 = vunpack.c.h.b16 %v170
      %v595 = vunpack.c.l.b16 %v171
      %v596 = vunpack.c.h.b16 %v171
      %v597 = vunpack.c.l.b16 %v172
      %v598 = vunpack.c.h.b16 %v172
      %v599 = vunpack.c.l.b16 %v173
      %v600 = vunpack.c.h.b16 %v173
      %v601 = vunpack.c.l.b16 %v174
      %v602 = vunpack.c.h.b16 %v174
      %v603 = vunpack.c.l.b16 %v175
      %v604 = vunpack.c.h.b16 %v175
      %v605 = vunpack.c.l.b16 %v176
      %v606 = vunpack.c.h.b16 %v176
      %v607 = vunpack.c.l.b16 %v177
      %v608 = vunpack.c.h.b16 %v177
      %v609 = vunpack.c.l.b16 %v178
      %v610 = vunpack.c.h.b16 %v178
      %v611 = vunpack.c.l.b16 %v179
      %v612 = vunpack.c.h.b16 %v179
      %v613 = vunpack.c.l.b16 %v180
      %v614 = vunpack.c.h.b16 %v180
      %v615 = vunpack.c.l.b16 %v181
      %v616 = vunpack.c.h.b16 %v181
      %v617 = vunpack.c.l.b16 %v182
      %v618 = vunpack.c.h.b16 %v182
      %v619 = vpack.c.b16 %v365, %v363
      %v620 = vpack.c.b16 %v366, %v364
      %v621 = vpack.c.b16 %v369, %v367
      %v622 = vpack.c.b16 %v370, %v368
      %v623 = vpack.c.b16 %v373, %v371
      %v624 = vpack.c.b16 %v374, %v372
      %v625 = vpack.c.b16 %v377, %v375
      %v626 = vpack.c.b16 %v378, %v376
      %v627 = vpack.c.b16 %v381, %v379
      %v628 = vpack.c.b16 %v382, %v380
      %v629 = vpack.c.b16 %v385, %v383
      %v630 = vpack.c.b16 %v386, %v384
      %v631 = vpack.c.b16 %v389, %v387
      %v632 = vpack.c.b16 %v390, %v388
      %v633 = vpack.c.b16 %v393, %v391
      %v634 = vpack.c.b16 %v394, %v392
      %v635 = vpack.c.b16 %v397, %v395
      %v636 = vpack.c.b16 %v398, %v396
      %v637 = vpack.c.b16 %v401, %v399
      %v638 = vpack.c.b16 %v402, %v400
      %v639 = vpack.c.b16 %v405, %v403
      %v640 = vpack.c.b16 %v406, %v404
      %v641 = vpack.c.b16 %v409, %v407
      %v642 = vpack.c.b16 %v410, %v408
      %v643 = vpack.c.b16 %v413, %v411
      %v644 = vpack.c.b16 %v414, %v412
      %v645 = vpack.c.b16 %v417, %v415
      %v646 = vpack.c.b16 %v418, %v416
      %v647 = vpack.c.b16 %v421, %v419
      %v648 = vpack.c.b16 %v422, %v420
      %v649 = vpack.c.b16 %v425, %v423
      %v650 = vpack.c.b16 %v426, %v424
      %v651 = vpack.c.b16 %v429, %v427
      %v652 = vpack.c.b16 %v430, %v428
      %v653 = vpack.c.b16 %v433, %v431
      %v654 = vpack.c.b16 %v434, %v432
      %v655 = vpack.c.b16 %v437, %v435
      %v656 = vpack.c.b16 %v438, %v436
      %v657 = vpack.c.b16 %v441, %v439
      %v658 = vpack.c.b16 %v442, %v440
      %v659 = vpack.c.b16 %v445, %v443
      %v660 = vpack.c.b16 %v446, %v444
      %v661 = vpack.c.b16 %v449, %v447
      %v662 = vpack.c.b16 %v450, %v448
      %v663 = vpack.c.b16 %v453, %v451
      %v664 = vpack.c.b16 %v454, %v452
      %v665 = vpack.c.b16 %v457, %v455
      %v666 = vpack.c.b16 %v458, %v456
      %v667 = vpack.c.b16 %v461, %v459
      %v668 = vpack.c.b16 %v462, %v460
      %v669 = vpack.c.b16 %v465, %v463
      %v670 = vpack.c.b16 %v466, %v464
      %v671 = vpack.c.b16 %v469, %v467
      %v672 = vpack.c.b16 %v470, %v468
      %v673 = vpack.c.b16 %v473, %v471
      %v674 = vpack.c.b16 %v474, %v472
      %v675 = vpack.c.b16 %v477, %v475
      %v676 = vpack.c.b16 %v478, %v476
      %v677 = vpack.c.b16 %v481, %v479
      %v678 = vpack.c.b16 %v482, %v480
      %v679 = vpack.c.b16 %v485, %v483
      %v680 = vpack.c.b16 %v486, %v484
      %v681 = vpack.c.b16 %v489, %v487
      %v682 = vpack.c.b16 %v490, %v488
      %v683 = vpack.c.b16 %v493, %v491
      %v684 = vpack.c.b16 %v494, %v492
      %v685 = vpack.c.b16 %v497, %v495
      %v686 = vpack.c.b16 %v498, %v496
      %v687 = vpack.c.b16 %v501, %v499
      %v688 = vpack.c.b16 %v502, %v500
      %v689 = vpack.c.b16 %v505, %v503
      %v690 = vpack.c.b16 %v506, %v504
      %v691 = vpack.c.b16 %v509, %v507
      %v692 = vpack.c.b16 %v510, %v508
      %v693 = vpack.c.b16 %v513, %v511
      %v694 = vpack.c.b16 %v514, %v512
      %v695 = vpack.c.b16 %v517, %v515
      %v696 = vpack.c.b16 %v518, %v516
      %v697 = vpack.c.b16 %v521, %v519
      %v698 = vpack.c.b16 %v522, %v520
      %v699 = vpack.c.b16 %v525, %v523
      %v700 = vpack.c.b16 %v526, %v524
      %v701 = vpack.c.b16 %v529, %v527
      %v702 = vpack.c.b16 %v530, %v528
      %v703 = vpack.c.b16 %v533, %v531
      %v704 = vpack.c.b16 %v534, %v532
      %v705 = vpack.c.b16 %v537, %v535
      %v706 = vpack.c.b16 %v538, %v536
      %v707 = vpack.c.b16 %v541, %v539
      %v708 = vpack.c.b16 %v542, %v540
      %v709 = vpack.c.b16 %v545, %v543
      %v710 = vpack.c.b16 %v546, %v544
      %v711 = vpack.c.b16 %v549, %v547
      %v712 = vpack.c.b16 %v550, %v548
      %v713 = vpack.c.b16 %v553, %v551
      %v714 = vpack.c.b16 %v554, %v552
      %v715 = vpack.c.b16 %v557, %v555
      %v716 = vpack.c.b16 %v558, %v556
      %v717 = vpack.c.b16 %v561, %v559
      %v718 = vpack.c.b16 %v562, %v560
      %v719 = vpack.c.b16 %v565, %v563
      %v720 = vpack.c.b16 %v566, %v564
      %v721 = vpack.c.b16 %v569, %v567
      %v722 = vpack.c.b16 %v570, %v568
      %v723 = vpack.c.b16 %v573, %v571
      %v724 = vpack.c.b16 %v574, %v572
      %v725 = vpack.c.b16 %v577, %v575
      %v726 = vpack.c.b16 %v578, %v576
      %v727 = vpack.c.b16 %v581, %v579
      %v728 = vpack.c.b16 %v582, %v580
      %v729 = vpack.c.b16 %v585, %v583
      %v730 = vpack.c.b16 %v586, %v584
      %v731 = vpack.c.b16 %v589, %v587
      %v732 = vpack.c.b16 %v590, %v588
      %v733 = vpack.c.b16 %v593, %v591
      %v734 = vpack.c.b16 %v594, %v592
      %v735 = vpack.c.b16 %v597, %v595
      %v736 = vpack.c.b16 %v598, %v596
      %v737 = vpack.c.b16 %v601, %v599
      %v738 = vpack.c.b16 %v602, %v600
      %v739 = vpack.c.b16 %v605, %v603
      %v740 = vpack.c.b16 %v606, %v604
      %v741 = vpack.c.b16 %v609, %v607
      %v742 = vpack.c.b16 %v610, %v608
      %v743 = vpack.c.b16 %v613, %v611
      %v744 = vpack.c.b16 %v614, %v612
      %v745 = vpack.c.b16 %v617, %v615
      %v746 = vpack.c.b16 %v618, %v616
      %875 = vmatprep.subr.bf16.mxu0 %v620
      %876 = vmatpush1.bf16.msra.mxu0 %v619
      %877 = vmatprep.subr.bf16.mxu0 %v622
      %878 = vmatpush1.bf16.msra.mxu0 %v621
      %879 = vmatprep.subr.bf16.mxu0 %v624
      %880 = vmatpush1.bf16.msra.mxu0 %v623
      %881 = vmatprep.subr.bf16.mxu0 %v626
      %882 = vmatpush1.bf16.msra.mxu0 %v625
      %883 = vmatprep.subr.bf16.mxu0 %v628
      %884 = vmatpush1.bf16.msra.mxu0 %v627
      %885 = vmatprep.subr.bf16.mxu0 %v630
      %886 = vmatpush1.bf16.msra.mxu0 %v629
      %887 = vmatprep.subr.bf16.mxu0 %v632
      %888 = vmatpush1.bf16.msra.mxu0 %v631
      %889 = vmatprep.subr.bf16.mxu0 %v634
      %890 = vmatpush1.bf16.msra.mxu0 %v633
      %891 = vmatprep.subr.bf16.mxu0 %v636
      %892 = vmatpush1.bf16.msra.mxu0 %v635
      %893 = vmatprep.subr.bf16.mxu0 %v638
      %894 = vmatpush1.bf16.msra.mxu0 %v637
      %895 = vmatprep.subr.bf16.mxu0 %v640
      %896 = vmatpush1.bf16.msra.mxu0 %v639
      %897 = vmatprep.subr.bf16.mxu0 %v642
      %898 = vmatpush1.bf16.msra.mxu0 %v641
      %899 = vmatprep.subr.bf16.mxu0 %v644
      %900 = vmatpush1.bf16.msra.mxu0 %v643
      %901 = vmatprep.subr.bf16.mxu0 %v646
      %902 = vmatpush1.bf16.msra.mxu0 %v645
      %903 = vmatprep.subr.bf16.mxu0 %v648
      %904 = vmatpush1.bf16.msra.mxu0 %v647
      %905 = vmatprep.subr.bf16.mxu0 %v650
      %906 = vmatpush1.bf16.msra.mxu0 %v649
      %907 = vmatprep.mubr.bf16.mxu0 %v220
      %908 = vmatmul.mubr.bf16.gmra.mrb[0].mxu0 %v219
      %v909 = vpop.f32.mrb[0].mxu0
      %v910 = vadd.f32 %v188, %v909
      %v911 = vpop.f32.mrb[0].mxu0
      %v912 = vadd.f32 %v192, %v911
      %v913 = vpop.f32.mrb[0].mxu0
      %v914 = vadd.f32 %v188, %v913
      %v915 = vpop.f32.mrb[0].mxu0
      %v916 = vadd.f32 %v192, %v915
      %917 = vdwg.mxu0
      %918 = vmatprep.subr.bf16.mxu0 %v652
      %919 = vmatpush1.bf16.msra.mxu0 %v651
      %920 = vmatprep.subr.bf16.mxu0 %v654
      %921 = vmatpush1.bf16.msra.mxu0 %v653
      %922 = vmatprep.subr.bf16.mxu0 %v656
      %923 = vmatpush1.bf16.msra.mxu0 %v655
      %924 = vmatprep.subr.bf16.mxu0 %v658
      %925 = vmatpush1.bf16.msra.mxu0 %v657
      %926 = vmatprep.subr.bf16.mxu0 %v660
      %927 = vmatpush1.bf16.msra.mxu0 %v659
      %928 = vmatprep.subr.bf16.mxu0 %v662
      %929 = vmatpush1.bf16.msra.mxu0 %v661
      %930 = vmatprep.subr.bf16.mxu0 %v664
      %931 = vmatpush1.bf16.msra.mxu0 %v663
      %932 = vmatprep.subr.bf16.mxu0 %v666
      %933 = vmatpush1.bf16.msra.mxu0 %v665
      %934 = vmatprep.subr.bf16.mxu0 %v668
      %935 = vmatpush1.bf16.msra.mxu0 %v667
      %936 = vmatprep.subr.bf16.mxu0 %v670
      %937 = vmatpush1.bf16.msra.mxu0 %v669
      %938 = vmatprep.subr.bf16.mxu0 %v672
      %939 = vmatpush1.bf16.msra.mxu0 %v671
      %940 = vmatprep.subr.bf16.mxu0 %v674
      %941 = vmatpush1.bf16.msra.mxu0 %v673
      %942 = vmatprep.subr.bf16.mxu0 %v676
      %943 = vmatpush1.bf16.msra.mxu0 %v675
      %944 = vmatprep.subr.bf16.mxu0 %v678
      %945 = vmatpush1.bf16.msra.mxu0 %v677
      %946 = vmatprep.subr.bf16.mxu0 %v680
      %947 = vmatpush1.bf16.msra.mxu0 %v679
      %948 = vmatprep.subr.bf16.mxu0 %v682
      %949 = vmatpush1.bf16.msra.mxu0 %v681
      %950 = vmatprep.mubr.bf16.mxu0 %v222
      %951 = vmatmul.mubr.bf16.gmra.mrb[0].mxu0 %v221
      %v952 = vpop.f32.mrb[0].mxu0
      %v953 = vadd.f32 %v910, %v952
      %v954 = vpop.f32.mrb[0].mxu0
      %v955 = vadd.f32 %v912, %v954
      %v956 = vpop.f32.mrb[0].mxu0
      %v957 = vadd.f32 %v914, %v956
      %v958 = vpop.f32.mrb[0].mxu0
      %v959 = vadd.f32 %v916, %v958
      %960 = vdwg.mxu0
      %961 = vmatprep.subr.bf16.mxu0 %v684
      %962 = vmatpush1.bf16.msra.mxu0 %v683
      %963 = vmatprep.subr.bf16.mxu0 %v686
      %964 = vmatpush1.bf16.msra.mxu0 %v685
      %965 = vmatprep.subr.bf16.mxu0 %v688
      %966 = vmatpush1.bf16.msra.mxu0 %v687
      %967 = vmatprep.subr.bf16.mxu0 %v690
      %968 = vmatpush1.bf16.msra.mxu0 %v689
      %969 = vmatprep.subr.bf16.mxu0 %v692
      %970 = vmatpush1.bf16.msra.mxu0 %v691
      %971 = vmatprep.subr.bf16.mxu0 %v694
      %972 = vmatpush1.bf16.msra.mxu0 %v693
      %973 = vmatprep.subr.bf16.mxu0 %v696
      %974 = vmatpush1.bf16.msra.mxu0 %v695
      %975 = vmatprep.subr.bf16.mxu0 %v698
      %976 = vmatpush1.bf16.msra.mxu0 %v697
      %977 = vmatprep.subr.bf16.mxu0 %v700
      %978 = vmatpush1.bf16.msra.mxu0 %v699
      %979 = vmatprep.subr.bf16.mxu0 %v702
      %980 = vmatpush1.bf16.msra.mxu0 %v701
      %981 = vmatprep.subr.bf16.mxu0 %v704
      %982 = vmatpush1.bf16.msra.mxu0 %v703
      %983 = vmatprep.subr.bf16.mxu0 %v706
      %984 = vmatpush1.bf16.msra.mxu0 %v705
      %985 = vmatprep.subr.bf16.mxu0 %v708
      %986 = vmatpush1.bf16.msra.mxu0 %v707
      %987 = vmatprep.subr.bf16.mxu0 %v710
      %988 = vmatpush1.bf16.msra.mxu0 %v709
      %989 = vmatprep.subr.bf16.mxu0 %v712
      %990 = vmatpush1.bf16.msra.mxu0 %v711
      %991 = vmatprep.subr.bf16.mxu0 %v714
      %992 = vmatpush1.bf16.msra.mxu0 %v713
      %993 = vmatprep.mubr.bf16.mxu0 %v224
      %994 = vmatmul.mubr.bf16.gmra.mrb[0].mxu0 %v223
      %v995 = vpop.f32.mrb[0].mxu0
      %v996 = vadd.f32 %v953, %v995
      %v997 = vpop.f32.mrb[0].mxu0
      %v998 = vadd.f32 %v955, %v997
      %v999 = vpop.f32.mrb[0].mxu0
      %v1000 = vadd.f32 %v957, %v999
      %v1001 = vpop.f32.mrb[0].mxu0
      %v1002 = vadd.f32 %v959, %v1001
      %1003 = vdwg.mxu0
      %1004 = vmatprep.subr.bf16.mxu0 %v716
      %1005 = vmatpush1.bf16.msra.mxu0 %v715
      %1006 = vmatprep.subr.bf16.mxu0 %v718
      %1007 = vmatpush1.bf16.msra.mxu0 %v717
      %1008 = vmatprep.subr.bf16.mxu0 %v720
      %1009 = vmatpush1.bf16.msra.mxu0 %v719
      %1010 = vmatprep.subr.bf16.mxu0 %v722
      %1011 = vmatpush1.bf16.msra.mxu0 %v721
      %1012 = vmatprep.subr.bf16.mxu0 %v724
      %1013 = vmatpush1.bf16.msra.mxu0 %v723
      %1014 = vmatprep.subr.bf16.mxu0 %v726
      %1015 = vmatpush1.bf16.msra.mxu0 %v725
      %1016 = vmatprep.subr.bf16.mxu0 %v728
      %1017 = vmatpush1.bf16.msra.mxu0 %v727
      %1018 = vmatprep.subr.bf16.mxu0 %v730
      %1019 = vmatpush1.bf16.msra.mxu0 %v729
      %1020 = vmatprep.subr.bf16.mxu0 %v732
      %1021 = vmatpush1.bf16.msra.mxu0 %v731
      %1022 = vmatprep.subr.bf16.mxu0 %v734
      %1023 = vmatpush1.bf16.msra.mxu0 %v733
      %1024 = vmatprep.subr.bf16.mxu0 %v736
      %1025 = vmatpush1.bf16.msra.mxu0 %v735
      %1026 = vmatprep.subr.bf16.mxu0 %v738
      %1027 = vmatpush1.bf16.msra.mxu0 %v737
      %1028 = vmatprep.subr.bf16.mxu0 %v740
      %1029 = vmatpush1.bf16.msra.mxu0 %v739
      %1030 = vmatprep.subr.bf16.mxu0 %v742
      %1031 = vmatpush1.bf16.msra.mxu0 %v741
      %1032 = vmatprep.subr.bf16.mxu0 %v744
      %1033 = vmatpush1.bf16.msra.mxu0 %v743
      %1034 = vmatprep.subr.bf16.mxu0 %v746
      %1035 = vmatpush1.bf16.msra.mxu0 %v745
      %1036 = vmatprep.mubr.bf16.mxu0 %v226
      %1037 = vmatmul.mubr.bf16.gmra.mrb[0].mxu0 %v225
      %v1038 = vpop.f32.mrb[0].mxu0
      %v1039 = vadd.f32 %v996, %v1038
      %v1040 = vpop.f32.mrb[0].mxu0
      %v1041 = vadd.f32 %v998, %v1040
      %v1042 = vpop.f32.mrb[0].mxu0
      %v1043 = vadd.f32 %v1000, %v1042
      %v1044 = vpop.f32.mrb[0].mxu0
      %v1045 = vadd.f32 %v1002, %v1044
      %1046 = vdwg.mxu0
      %v1047 = vmul.f32 %v1039, 0.5
      %v1048 = vmul.f32 %v1041, 0.5
      %v1049 = vmul.f32 %v1043, 0.5
      %v1050 = vmul.f32 %v1045, 0.5
      %v1051 = vmul.f32 %v1039, 0.70710677
      %v1052 = vmul.f32 %v1041, 0.70710677
      %v1053 = vmul.f32 %v1043, 0.70710677
      %v1054 = vmul.f32 %v1045, 0.70710677
      %v1055 = verf.f32.pop %v1051
      %v1056 = verf.f32.pop %v1052
      %v1057 = verf.f32.pop %v1053
      %v1058 = verf.f32.pop %v1054
      %v1059 = vadd.f32 %v1055, 1.0
      %v1060 = vadd.f32 %v1056, 1.0
      %v1061 = vadd.f32 %v1057, 1.0
      %v1062 = vadd.f32 %v1058, 1.0
      %v1063 = vmul.f32 %v1047, %v1059
      %v1064 = vmul.f32 %v1048, %v1060
      %v1065 = vmul.f32 %v1049, %v1061
      %v1066 = vmul.f32 %v1050, %v1062
      %v1067 = vpack.c.bf16 %v1065, %v1063
      %v1068 = vpack.c.bf16 %v1066, %v1064
      %1069 = vst [vmem:[#allocation2] sm:$0xff] %v1067
      %1070 = vst [vmem:[#allocation2 + $0x8] sm:$0xff] %v1068
    $region37: #{_teacher_student_forward.1} parent=1 // pred_fallthru
      _
    %v1071 = vld [vmem:[#allocation2] sm:$0xff]
    %v1072 = vld [vmem:[#allocation2 + $0x8] sm:$0xff]
    %v1073 = vld [vmem:[%s3] sm:$0xf]
    %v1074 = vld [vmem:[%s3 + $0x4] sm:$0xf]
    %v1075 = vld [vmem:[%s3 + $0x8] sm:$0xf]
    %v1076 = vld [vmem:[%s3 + $0xc] sm:$0xf]
    %v1077 = vld [vmem:[%s3 + $0x10] sm:$0xf]
    %v1078 = vld [vmem:[%s3 + $0x14] sm:$0xf]
    %v1079 = vld [vmem:[%s3 + $0x18] sm:$0xf]
    %v1080 = vld [vmem:[%s3 + $0x1c] sm:$0xf]
    %v1081 = vld [vmem:[%s3 + $0x20] sm:$0xf]
    %v1082 = vld [vmem:[%s3 + $0x24] sm:$0xf]
    %v1083 = vld [vmem:[%s3 + $0x28] sm:$0xf]
    %v1084 = vld [vmem:[%s3 + $0x2c] sm:$0xf]
    %v1085 = vld [vmem:[%s3 + $0x30] sm:$0xf]
    %v1086 = vld [vmem:[%s3 + $0x34] sm:$0xf]
    %v1087 = vld [vmem:[%s3 + $0x38] sm:$0xf]
    %v1088 = vld [vmem:[%s3 + $0x3c] sm:$0xf]
    %v1089 = vld [vmem:[%s5] sm:$0x1]
    %v1091 = vlaneseq
    %v1092 = vshrl.u32 %v1091, 7
    %v1093 = vsub.s32 0, %v1092
    %v1094 = vrot.slane %v1089, %v1093
    %v1112 = vunpack.c.l.b16 %v1073
    %v1113 = vunpack.c.l.b16 %v1074
    %v1114 = vunpack.c.l.b16 %v1075
    %v1115 = vunpack.c.l.b16 %v1076
    %v1116 = vunpack.c.l.b16 %v1077
    %v1117 = vunpack.c.l.b16 %v1078
    %v1118 = vunpack.c.l.b16 %v1079
    %v1119 = vunpack.c.l.b16 %v1080
    %v1120 = vunpack.c.l.b16 %v1081
    %v1121 = vunpack.c.l.b16 %v1082
    %v1122 = vunpack.c.l.b16 %v1083
    %v1123 = vunpack.c.l.b16 %v1084
    %v1124 = vunpack.c.l.b16 %v1085
    %v1125 = vunpack.c.l.b16 %v1086
    %v1126 = vunpack.c.l.b16 %v1087
    %v1127 = vunpack.c.l.b16 %v1088
    %v1128 = vpack.c.b16 %v1113, %v1112
    %v1129 = vpack.c.b16 %v1115, %v1114
    %v1130 = vpack.c.b16 %v1117, %v1116
    %v1131 = vpack.c.b16 %v1119, %v1118
    %v1132 = vpack.c.b16 %v1121, %v1120
    %v1133 = vpack.c.b16 %v1123, %v1122
    %v1134 = vpack.c.b16 %v1125, %v1124
    %v1135 = vpack.c.b16 %v1127, %v1126
    %1144 = vmatprep.subr.bf16.mxu0 0
    %1145 = vmatpush1.bf16.msra.mxu0 %v1128
    %1146 = vmatprep.subr.bf16.mxu0 0
    %1147 = vmatpush1.bf16.msra.mxu0 %v1129
    %1148 = vmatprep.subr.bf16.mxu0 0
    %1149 = vmatpush1.bf16.msra.mxu0 %v1130
    %1150 = vmatprep.subr.bf16.mxu0 0
    %1151 = vmatpush1.bf16.msra.mxu0 %v1131
    %1152 = vmatprep.subr.bf16.mxu0 0
    %1153 = vmatpush1.bf16.msra.mxu0 %v1132
    %1154 = vmatprep.subr.bf16.mxu0 0
    %1155 = vmatpush1.bf16.msra.mxu0 %v1133
    %1156 = vmatprep.subr.bf16.mxu0 0
    %1157 = vmatpush1.bf16.msra.mxu0 %v1134
    %1158 = vmatprep.subr.bf16.mxu0 0
    %1159 = vmatpush1.bf16.msra.mxu0 %v1135
    %1160 = vmatprep.subr.bf16.mxu0 0
    %1161 = vmatpush1.bf16.msra.mxu0 0
    %1162 = vmatprep.subr.bf16.mxu0 0
    %1163 = vmatpush1.bf16.msra.mxu0 0
    %1164 = vmatprep.subr.bf16.mxu0 0
    %1165 = vmatpush1.bf16.msra.mxu0 0
    %1166 = vmatprep.subr.bf16.mxu0 0
    %1167 = vmatpush1.bf16.msra.mxu0 0
    %1168 = vmatprep.subr.bf16.mxu0 0
    %1169 = vmatpush1.bf16.msra.mxu0 0
    %1170 = vmatprep.subr.bf16.mxu0 0
    %1171 = vmatpush1.bf16.msra.mxu0 0
    %1172 = vmatprep.subr.bf16.mxu0 0
    %1173 = vmatpush1.bf16.msra.mxu0 0
    %1174 = vmatprep.subr.bf16.mxu0 0
    %1175 = vmatpush1.bf16.msra.mxu0 0
    %1176 = vmatprep.mubr.bf16.mxu0 0
    %1177 = vmatmul.mubr.bf16.gmra.mrb[0].mxu0 %v1071
    %v1178 = vpop.f32.mrb[0].mxu0
    %v1179 = vadd.f32 %v1094, %v1178
    %v1180 = vpop.f32.mrb[0].mxu0
    %v1181 = vpop.f32.mrb[0].mxu0
    %v1182 = vadd.f32 %v1094, %v1181
    %v1183 = vpop.f32.mrb[0].mxu0
    %1184 = vdwg.mxu0
    %vm1185 = vcmask 523264
    %1186 = vst.msk [vmem:[%s7] sm:$0xff] %vm1185, %v1179
    %1187 = vst.msk [vmem:[%s7 + $0x8] sm:$0xff] %vm1185, %v1182
    %v1188 = vld [vmem:[%s4] sm:$0xf]
    %v1189 = vld [vmem:[%s4 + $0x4] sm:$0xf]
    %v1190 = vld [vmem:[%s4 + $0x8] sm:$0xf]
    %v1191 = vld [vmem:[%s4 + $0xc] sm:$0xf]
    %v1192 = vld [vmem:[%s4 + $0x10] sm:$0xf]
    %v1193 = vld [vmem:[%s4 + $0x14] sm:$0xf]
    %v1194 = vld [vmem:[%s4 + $0x18] sm:$0xf]
    %v1195 = vld [vmem:[%s4 + $0x1c] sm:$0xf]
    %v1196 = vld [vmem:[%s4 + $0x20] sm:$0xf]
    %v1197 = vld [vmem:[%s4 + $0x24] sm:$0xf]
    %v1198 = vld [vmem:[%s4 + $0x28] sm:$0xf]
    %v1199 = vld [vmem:[%s4 + $0x2c] sm:$0xf]
    %v1200 = vld [vmem:[%s4 + $0x30] sm:$0xf]
    %v1201 = vld [vmem:[%s4 + $0x34] sm:$0xf]
    %v1202 = vld [vmem:[%s4 + $0x38] sm:$0xf]
    %v1203 = vld [vmem:[%s4 + $0x3c] sm:$0xf]
    %v1204 = vld [vmem:[%s6] sm:$0x1]
    %v1206 = vlaneseq
    %v1207 = vshrl.u32 %v1206, 7
    %v1208 = vsub.s32 0, %v1207
    %v1209 = vrot.slane %v1204, %v1208
    %v1227 = vunpack.c.l.b16 %v1188
    %v1228 = vunpack.c.l.b16 %v1189
    %v1229 = vunpack.c.l.b16 %v1190
    %v1230 = vunpack.c.l.b16 %v1191
    %v1231 = vunpack.c.l.b16 %v1192
    %v1232 = vunpack.c.l.b16 %v1193
    %v1233 = vunpack.c.l.b16 %v1194
    %v1234 = vunpack.c.l.b16 %v1195
    %v1235 = vunpack.c.l.b16 %v1196
    %v1236 = vunpack.c.l.b16 %v1197
    %v1237 = vunpack.c.l.b16 %v1198
    %v1238 = vunpack.c.l.b16 %v1199
    %v1239 = vunpack.c.l.b16 %v1200
    %v1240 = vunpack.c.l.b16 %v1201
    %v1241 = vunpack.c.l.b16 %v1202
    %v1242 = vunpack.c.l.b16 %v1203
    %v1243 = vpack.c.b16 %v1228, %v1227
    %v1244 = vpack.c.b16 %v1230, %v1229
    %v1245 = vpack.c.b16 %v1232, %v1231
    %v1246 = vpack.c.b16 %v1234, %v1233
    %v1247 = vpack.c.b16 %v1236, %v1235
    %v1248 = vpack.c.b16 %v1238, %v1237
    %v1249 = vpack.c.b16 %v1240, %v1239
    %v1250 = vpack.c.b16 %v1242, %v1241
    %1259 = vmatprep.subr.bf16.mxu0 0
    %1260 = vmatpush1.bf16.msra.mxu0 %v1243
    %1261 = vmatprep.subr.bf16.mxu0 0
    %1262 = vmatpush1.bf16.msra.mxu0 %v1244
    %1263 = vmatprep.subr.bf16.mxu0 0
    %1264 = vmatpush1.bf16.msra.mxu0 %v1245
    %1265 = vmatprep.subr.bf16.mxu0 0
    %1266 = vmatpush1.bf16.msra.mxu0 %v1246
    %1267 = vmatprep.subr.bf16.mxu0 0
    %1268 = vmatpush1.bf16.msra.mxu0 %v1247
    %1269 = vmatprep.subr.bf16.mxu0 0
    %1270 = vmatpush1.bf16.msra.mxu0 %v1248
    %1271 = vmatprep.subr.bf16.mxu0 0
    %1272 = vmatpush1.bf16.msra.mxu0 %v1249
    %1273 = vmatprep.subr.bf16.mxu0 0
    %1274 = vmatpush1.bf16.msra.mxu0 %v1250
    %1275 = vmatprep.subr.bf16.mxu0 0
    %1276 = vmatpush1.bf16.msra.mxu0 0
    %1277 = vmatprep.subr.bf16.mxu0 0
    %1278 = vmatpush1.bf16.msra.mxu0 0
    %1279 = vmatprep.subr.bf16.mxu0 0
    %1280 = vmatpush1.bf16.msra.mxu0 0
    %1281 = vmatprep.subr.bf16.mxu0 0
    %1282 = vmatpush1.bf16.msra.mxu0 0
    %1283 = vmatprep.subr.bf16.mxu0 0
    %1284 = vmatpush1.bf16.msra.mxu0 0
    %1285 = vmatprep.subr.bf16.mxu0 0
    %1286 = vmatpush1.bf16.msra.mxu0 0
    %1287 = vmatprep.subr.bf16.mxu0 0
    %1288 = vmatpush1.bf16.msra.mxu0 0
    %1289 = vmatprep.subr.bf16.mxu0 0
    %1290 = vmatpush1.bf16.msra.mxu0 0
    %1291 = vmatprep.mubr.bf16.mxu0 0
    %1292 = vmatmul.mubr.bf16.gmra.mrb[0].mxu0 %v1072
    %v1293 = vpop.f32.mrb[0].mxu0
    %v1294 = vadd.f32 %v1209, %v1293
    %v1295 = vpop.f32.mrb[0].mxu0
    %v1296 = vpop.f32.mrb[0].mxu0
    %v1297 = vadd.f32 %v1209, %v1296
    %v1298 = vpop.f32.mrb[0].mxu0
    %1299 = vdwg.mxu0
    %1300 = vst.msk [vmem:[%s8] sm:$0xff] %vm1185, %v1294
    %1301 = vst.msk [vmem:[%s8 + $0x8] sm:$0xff] %vm1185, %v1297
    // Predicated region
    $region38: #{_teacher_student_forward.1} parent=1 // pred_check
      _
    $region39: #{_teacher_student_forward.1} parent=1 // pred_check_branch
      %1303 = sbr.rel (0) target = $region41
    $region40: #{_teacher_student_forward.1} parent=1 // pred_region
      _
    $region41: #{_teacher_student_forward.1} parent=1 // pred_fallthru
      _
    // Predicated region
    $region42: #{_teacher_student_forward.1} parent=1 // pred_check
      _
    $region43: #{_teacher_student_forward.1} parent=1 // pred_check_branch
      %1305 = sbr.rel (0) target = $region45
    $region44: #{_teacher_student_forward.1} parent=1 // pred_region
      _
    $region45: #{_teacher_student_forward.1} parent=1 // pred_fallthru
      _
    // Predicated region
    $region46: #{_teacher_student_forward.1} parent=1 // pred_check
      _
    $region47: #{_teacher_student_forward.1} parent=1 // pred_check_branch
      %1307 = sbr.rel (0) target = $region49
    $region48: #{_teacher_student_forward.1} parent=1 // pred_region
      _
    $region49: #{_teacher_student_forward.1} parent=1 // pred_fallthru
      _
    // Predicated region
    $region50: #{_teacher_student_forward.1} parent=1 // pred_check
      _
    $region51: #{_teacher_student_forward.1} parent=1 // pred_check_branch
      %1309 = sbr.rel (0) target = $region53
    $region52: #{_teacher_student_forward.1} parent=1 // pred_region
      _
    $region53: #{_teacher_student_forward.1} parent=1 // pred_fallthru
      _
    %1310 = vsyncpa [#allocation4], 1

</llo_original>
